<compile_context>
chip_gen: v5e
topology: v5e:2x2
jax: 0.10.0
libtpu: 0.0.40
codegen_flags: <defaults>
</compile_context>

<pallas_src>
import functools

import jax
import jax.numpy as jnp
from jax import lax
from jax.experimental import pallas as pl
from jax.experimental.pallas import tpu as pltpu


def _round_up(x, m):
    return (x + m - 1) // m * m


def resblock_kernel(x_ref, mask_ref, w1_ref, b1_ref, w2_ref, b2_ref, o_ref, *, Wp):
    """One grid step = a stack of images along the lane axis.

    x_ref   : (1, Cin_p, L)   zero-padded images, channels on sublanes,
                              flattened padded spatial (+ lane pad) on lanes,
                              L = imgs_per_step * Ppad
    mask_ref: (1, L)          1.0 at interior (real) pixels of each padded grid
    w1_ref  : (3, Cmid_p, 3*Cin_p)   conv1 weight, row dy, cols (dx, cin)
    b1_ref  : (Cmid_p, 1)
    w2_ref  : (3, Cin_p, 3*Cmid_p)   conv2 weight
    b2_ref  : (Cin_p, 1)
    o_ref   : (1, Cin_p, L)   residual output over padded grid (wrapper slices interior)
    """
    L = x_ref.shape[2]
    x = x_ref[0]                       # (Cin_p, L), lane-dense, aligned
    mask = mask_ref[...]               # (1, L)

    def conv3x3(a, w_ref):
        # a: (C, L) with zeros at every position a valid tap may read outside the
        # HxW interior (conv zero-padding ring / lane pad).  Taps are lane rolls:
        # tap[q] = a[q + (dy-1)*Wp + (dx-1)]; interior lanes never wrap.
        acc = None
        for dy in range(3):
            cols = []
            for dx in range(3):
                offc = (dy - 1) * Wp + (dx - 1)
                s = (-offc) % L
                cols.append(a if s == 0 else pltpu.roll(a, s, axis=1))
            chunk = jnp.concatenate(cols, axis=0)          # (3*C, L), in registers
            part = jnp.dot(w_ref[dy], chunk,
                           preferred_element_type=jnp.float32)
            acc = part if acc is None else acc + part
        return acc

    y1 = conv3x3(x, w1_ref) + b1_ref[...]                  # (Cmid_p, L)
    act = jnp.maximum(y1, 0.1 * y1) * mask                 # LeakyReLU(0.1), zero pad ring
    y2 = conv3x3(act, w2_ref) + b2_ref[...]                # (Cin_p, L)

    o_ref[0] = x + y2                                      # residual; border/pad lanes discarded


def resblock_forward(x_nchw, w1, b1, w2, b2):
    """x_nchw: (N, Cin, H, W) float32; w1/w2 HWIO. Returns (N, Cin, H, W)."""
    N, Cin, H, W = x_nchw.shape
    Cmid = w1.shape[-1]
    Hp, Wp = H + 2, W + 2
    P = Hp * Wp
    Ppad = _round_up(P, 128)                  # lane-tile aligned spatial (324 -> 384)
    Cin_p = _round_up(Cin, 8)                 # sublane-tile aligned channels
    Cmid_p = _round_up(Cmid, 8)

    # One grid step per TensorCore (v7x megacore); stack N/G images along lanes.
    G = 2 if (N >= 2 and N % 2 == 0) else 1
    Npb = N // G
    L = Npb * Ppad

    # Zero-pad: channels -> Cin_p, spatial +1 ring, flatten, lane-pad to Ppad, stack.
    x_pad = jnp.pad(x_nchw.astype(jnp.float32),
                    ((0, 0), (0, Cin_p - Cin), (1, 1), (1, 1)))        # (N,Cin_p,Hp,Wp)
    x_flat = jnp.pad(x_pad.reshape(N, Cin_p, P),
                     ((0, 0), (0, 0), (0, Ppad - P)))                  # (N,Cin_p,Ppad)
    x_stk = (x_flat.reshape(G, Npb, Cin_p, Ppad)
             .transpose(0, 2, 1, 3).reshape(G, Cin_p, L))              # (G,Cin_p,L)

    # Weights: zero-pad channels, rearrange to (dy, Cout_p, dx*Cin_p + cin).
    w1p = jnp.zeros((3, 3, Cin_p, Cmid_p), jnp.float32).at[:, :, :Cin, :Cmid].set(w1)
    w1m = jnp.transpose(w1p, (0, 3, 1, 2)).reshape(3, Cmid_p, 3 * Cin_p)
    w2p = jnp.zeros((3, 3, Cmid_p, Cin_p), jnp.float32).at[:, :, :Cmid, :Cin].set(w2)
    w2m = jnp.transpose(w2p, (0, 3, 1, 2)).reshape(3, Cin_p, 3 * Cmid_p)
    b1c = jnp.zeros((Cmid_p, 1), jnp.float32).at[:Cmid, 0].set(b1)
    b2c = jnp.zeros((Cin_p, 1), jnp.float32).at[:Cin, 0].set(b2)

    # Interior mask over one padded grid, tiled per stacked image (period Ppad).
    q = jnp.arange(Ppad)
    qi, qj = q // Wp, q % Wp
    m1 = ((q < P) & (qi >= 1) & (qi <= H) & (qj >= 1) & (qj <= W)).astype(jnp.float32)
    mask = jnp.tile(m1, (Npb,)).reshape(1, L)

    out_stk = pl.pallas_call(
        functools.partial(resblock_kernel, Wp=Wp),
        out_shape=jax.ShapeDtypeStruct((G, Cin_p, L), jnp.float32),
        grid_spec=pltpu.PrefetchScalarGridSpec(
            num_scalar_prefetch=0,
            grid=(G,),
            in_specs=[
                pl.BlockSpec((1, Cin_p, L), lambda n: (n, 0, 0)),
                pl.BlockSpec((1, L), lambda n: (0, 0)),                 # fetched once/core
                pl.BlockSpec((3, Cmid_p, 3 * Cin_p), lambda n: (0, 0, 0)),
                pl.BlockSpec((Cmid_p, 1), lambda n: (0, 0)),
                pl.BlockSpec((3, Cin_p, 3 * Cmid_p), lambda n: (0, 0, 0)),
                pl.BlockSpec((Cin_p, 1), lambda n: (0, 0)),
            ],
            out_specs=pl.BlockSpec((1, Cin_p, L), lambda n: (n, 0, 0)),
        ),
        compiler_params=pltpu.CompilerParams(dimension_semantics=("parallel",)),
    )(x_stk, mask, w1m, b1c, w2m, b2c)

    # Free un-stack + slice back to NCHW interior (no transpose of the spatial data).
    out = (out_stk.reshape(G, Cin_p, Npb, Ppad)
           .transpose(0, 2, 1, 3).reshape(N, Cin_p, Ppad))
    return out[:, :Cin, :P].reshape(N, Cin, Hp, Wp)[:, :, 1:H + 1, 1:W + 1]


def resblock_reference(x_nchw, w1, b1, w2, b2):
    """Pure-JAX reference (lax conv), same NCHW in/out semantics as the PyTorch module."""
    x = jnp.transpose(x_nchw, (0, 2, 3, 1))
    dn1 = lax.conv_dimension_numbers(x.shape, w1.shape, ('NHWC', 'HWIO', 'NHWC'))
    y = lax.conv_general_dilated(x, w1, (1, 1), 'SAME', dimension_numbers=dn1) + b1
    y = jnp.where(y > 0, y, 0.1 * y)
    dn2 = lax.conv_dimension_numbers(y.shape, w2.shape, ('NHWC', 'HWIO', 'NHWC'))
    y = lax.conv_general_dilated(y, w2, (1, 1), 'SAME', dimension_numbers=dn2) + b2
    return jnp.transpose(x + y, (0, 3, 1, 2))


if __name__ == "__main__":
    key = jax.random.PRNGKey(0)
    kx, k1, kb1, k2, kb2 = jax.random.split(key, 5)

    # Small shapes consistent with ResBlock(in_channels=4, out_channels=8, kernel_size=3)
    N, Cin, Cmid, H, W = 2, 4, 8, 16, 16
    x = jax.random.normal(kx, (N, Cin, H, W), jnp.float32)

    # Deterministic synthetic parameter init (uniform, Kaiming-style scale).
    fan1 = float(Cin * 3 * 3)
    w1 = jax.random.uniform(k1, (3, 3, Cin, Cmid), jnp.float32, -1.0, 1.0) / jnp.sqrt(fan1)
    b1 = jax.random.uniform(kb1, (Cmid,), jnp.float32, -1.0, 1.0) / jnp.sqrt(fan1)
    fan2 = float(Cmid * 3 * 3)
    w2 = jax.random.uniform(k2, (3, 3, Cmid, Cin), jnp.float32, -1.0, 1.0) / jnp.sqrt(fan2)
    b2 = jax.random.uniform(kb2, (Cin,), jnp.float32, -1.0, 1.0) / jnp.sqrt(fan2)

    out = resblock_forward(x, w1, b1, w2, b2)
    jax.block_until_ready(out)

    ref = resblock_reference(x, w1, b1, w2, b2)
    assert out.shape == x.shape
    assert jnp.allclose(out, ref, atol=1e-4, rtol=1e-4), "mismatch vs JAX reference"
    print("KERNEL_OK")
</pallas_src>

<mosaic_0001>
module attributes {stable_mosaic.version = 11 : i64} {
  func.func @resblock_kernel(%arg0: i32, %arg1: memref<1x8x384xf32, #tpu.memory_space<vmem>>, %arg2: memref<1x384xf32, #tpu.memory_space<vmem>>, %arg3: memref<3x8x24xf32, #tpu.memory_space<vmem>>, %arg4: memref<8x1xf32, #tpu.memory_space<vmem>>, %arg5: memref<3x8x24xf32, #tpu.memory_space<vmem>>, %arg6: memref<8x1xf32, #tpu.memory_space<vmem>>, %arg7: memref<1x8x384xf32, #tpu.memory_space<vmem>>) attributes {dimension_semantics = [#tpu.dimension_semantics<parallel>], iteration_bounds = array<i64: 2>, scalar_prefetch = 0 : i64, scratch_operands = 0 : i64, tpu.core_type = #tpu.core_type<tc>, window_params = [{transform_indices = @transform_0, window_bounds = array<i64: 1, 8, 384>}, {pipeline_mode = #tpu.pipeline_mode<synchronous>, transform_indices = @transform_1, window_bounds = array<i64: 1, 384>}, {pipeline_mode = #tpu.pipeline_mode<synchronous>, transform_indices = @transform_2, window_bounds = array<i64: 3, 8, 24>}, {pipeline_mode = #tpu.pipeline_mode<synchronous>, transform_indices = @transform_3, window_bounds = array<i64: 8, 1>}, {pipeline_mode = #tpu.pipeline_mode<synchronous>, transform_indices = @transform_4, window_bounds = array<i64: 3, 8, 24>}, {pipeline_mode = #tpu.pipeline_mode<synchronous>, transform_indices = @transform_5, window_bounds = array<i64: 8, 1>}, {transform_indices = @transform_6, window_bounds = array<i64: 1, 8, 384>}]} {
    %c0 = arith.constant 0 : index
    %c0_0 = arith.constant 0 : index
    %c0_1 = arith.constant 0 : index
    %0 = vector.load %arg1[%c0, %c0_0, %c0_1] : memref<1x8x384xf32, #tpu.memory_space<vmem>>, vector<1x8x384xf32>
    %1 = vector.shape_cast %0 : vector<1x8x384xf32> to vector<8x384xf32>
    %c0_2 = arith.constant 0 : index
    %c0_3 = arith.constant 0 : index
    %2 = vector.load %arg2[%c0_2, %c0_3] : memref<1x384xf32, #tpu.memory_space<vmem>>, vector<1x384xf32>
    %c19_i32 = arith.constant 19 : i32
    %3 = tpu.dynamic_rotate %1 by %c19_i32 dim 1 : vector<8x384xf32>, i32 -> vector<8x384xf32>
    %c18_i32 = arith.constant 18 : i32
    %4 = tpu.dynamic_rotate %1 by %c18_i32 dim 1 : vector<8x384xf32>, i32 -> vector<8x384xf32>
    %c17_i32 = arith.constant 17 : i32
    %5 = tpu.dynamic_rotate %1 by %c17_i32 dim 1 : vector<8x384xf32>, i32 -> vector<8x384xf32>
    %6 = tpu.concatenate %3, %4, %5 in 0 : vector<8x384xf32>, vector<8x384xf32>, vector<8x384xf32> -> vector<24x384xf32>
    %c0_4 = arith.constant 0 : index
    %c0_5 = arith.constant 0 : index
    %c0_6 = arith.constant 0 : index
    %7 = vector.load %arg3[%c0_4, %c0_5, %c0_6] : memref<3x8x24xf32, #tpu.memory_space<vmem>>, vector<1x8x24xf32>
    %8 = vector.shape_cast %7 : vector<1x8x24xf32> to vector<8x24xf32>
    %cst = arith.constant dense<0.000000e+00> : vector<8x384xf32>
    %9 = tpu.matmul %8, %6, %cst {dimension_numbers = #tpu.dot_dimension_numbers<[1], [0], [0], [1], [0, 0, 1, 1], [], []>} : vector<8x24xf32>, vector<24x384xf32>, vector<8x384xf32> -> vector<8x384xf32>
    %c1_i32 = arith.constant 1 : i32
    %10 = tpu.dynamic_rotate %1 by %c1_i32 dim 1 : vector<8x384xf32>, i32 -> vector<8x384xf32>
    %c383_i32 = arith.constant 383 : i32
    %11 = tpu.dynamic_rotate %1 by %c383_i32 dim 1 : vector<8x384xf32>, i32 -> vector<8x384xf32>
    %12 = tpu.concatenate %10, %1, %11 in 0 : vector<8x384xf32>, vector<8x384xf32>, vector<8x384xf32> -> vector<24x384xf32>
    %c1 = arith.constant 1 : index
    %c0_7 = arith.constant 0 : index
    %c0_8 = arith.constant 0 : index
    %13 = vector.load %arg3[%c1, %c0_7, %c0_8] : memref<3x8x24xf32, #tpu.memory_space<vmem>>, vector<1x8x24xf32>
    %14 = vector.shape_cast %13 : vector<1x8x24xf32> to vector<8x24xf32>
    %cst_9 = arith.constant dense<0.000000e+00> : vector<8x384xf32>
    %15 = tpu.matmul %14, %12, %cst_9 {dimension_numbers = #tpu.dot_dimension_numbers<[1], [0], [0], [1], [0, 0, 1, 1], [], []>} : vector<8x24xf32>, vector<24x384xf32>, vector<8x384xf32> -> vector<8x384xf32>
    %16 = arith.addf %9, %15 : vector<8x384xf32>
    %c367_i32 = arith.constant 367 : i32
    %17 = tpu.dynamic_rotate %1 by %c367_i32 dim 1 : vector<8x384xf32>, i32 -> vector<8x384xf32>
    %c366_i32 = arith.constant 366 : i32
    %18 = tpu.dynamic_rotate %1 by %c366_i32 dim 1 : vector<8x384xf32>, i32 -> vector<8x384xf32>
    %c365_i32 = arith.constant 365 : i32
    %19 = tpu.dynamic_rotate %1 by %c365_i32 dim 1 : vector<8x384xf32>, i32 -> vector<8x384xf32>
    %20 = tpu.concatenate %17, %18, %19 in 0 : vector<8x384xf32>, vector<8x384xf32>, vector<8x384xf32> -> vector<24x384xf32>
    %c2 = arith.constant 2 : index
    %c0_10 = arith.constant 0 : index
    %c0_11 = arith.constant 0 : index
    %21 = vector.load %arg3[%c2, %c0_10, %c0_11] : memref<3x8x24xf32, #tpu.memory_space<vmem>>, vector<1x8x24xf32>
    %22 = vector.shape_cast %21 : vector<1x8x24xf32> to vector<8x24xf32>
    %cst_12 = arith.constant dense<0.000000e+00> : vector<8x384xf32>
    %23 = tpu.matmul %22, %20, %cst_12 {dimension_numbers = #tpu.dot_dimension_numbers<[1], [0], [0], [1], [0, 0, 1, 1], [], []>} : vector<8x24xf32>, vector<24x384xf32>, vector<8x384xf32> -> vector<8x384xf32>
    %24 = arith.addf %16, %23 : vector<8x384xf32>
    %c0_13 = arith.constant 0 : index
    %c0_14 = arith.constant 0 : index
    %25 = vector.load %arg4[%c0_13, %c0_14] : memref<8x1xf32, #tpu.memory_space<vmem>>, vector<8x1xf32>
    %26 = vector.broadcast %25 : vector<8x1xf32> to vector<8x384xf32>
    %27 = arith.addf %24, %26 : vector<8x384xf32>
    %cst_15 = arith.constant 1.000000e-01 : f32
    %28 = vector.broadcast %cst_15 : f32 to vector<8x384xf32>
    %29 = arith.mulf %28, %27 : vector<8x384xf32>
    %30 = arith.maximumf %27, %29 : vector<8x384xf32>
    %31 = vector.broadcast %2 : vector<1x384xf32> to vector<8x384xf32>
    %32 = arith.mulf %30, %31 : vector<8x384xf32>
    %c19_i32_16 = arith.constant 19 : i32
    %33 = tpu.dynamic_rotate %32 by %c19_i32_16 dim 1 : vector<8x384xf32>, i32 -> vector<8x384xf32>
    %c18_i32_17 = arith.constant 18 : i32
    %34 = tpu.dynamic_rotate %32 by %c18_i32_17 dim 1 : vector<8x384xf32>, i32 -> vector<8x384xf32>
    %c17_i32_18 = arith.constant 17 : i32
    %35 = tpu.dynamic_rotate %32 by %c17_i32_18 dim 1 : vector<8x384xf32>, i32 -> vector<8x384xf32>
    %36 = tpu.concatenate %33, %34, %35 in 0 : vector<8x384xf32>, vector<8x384xf32>, vector<8x384xf32> -> vector<24x384xf32>
    %c0_19 = arith.constant 0 : index
    %c0_20 = arith.constant 0 : index
    %c0_21 = arith.constant 0 : index
    %37 = vector.load %arg5[%c0_19, %c0_20, %c0_21] : memref<3x8x24xf32, #tpu.memory_space<vmem>>, vector<1x8x24xf32>
    %38 = vector.shape_cast %37 : vector<1x8x24xf32> to vector<8x24xf32>
    %cst_22 = arith.constant dense<0.000000e+00> : vector<8x384xf32>
    %39 = tpu.matmul %38, %36, %cst_22 {dimension_numbers = #tpu.dot_dimension_numbers<[1], [0], [0], [1], [0, 0, 1, 1], [], []>} : vector<8x24xf32>, vector<24x384xf32>, vector<8x384xf32> -> vector<8x384xf32>
    %c1_i32_23 = arith.constant 1 : i32
    %40 = tpu.dynamic_rotate %32 by %c1_i32_23 dim 1 : vector<8x384xf32>, i32 -> vector<8x384xf32>
    %c383_i32_24 = arith.constant 383 : i32
    %41 = tpu.dynamic_rotate %32 by %c383_i32_24 dim 1 : vector<8x384xf32>, i32 -> vector<8x384xf32>
    %42 = tpu.concatenate %40, %32, %41 in 0 : vector<8x384xf32>, vector<8x384xf32>, vector<8x384xf32> -> vector<24x384xf32>
    %c1_25 = arith.constant 1 : index
    %c0_26 = arith.constant 0 : index
    %c0_27 = arith.constant 0 : index
    %43 = vector.load %arg5[%c1_25, %c0_26, %c0_27] : memref<3x8x24xf32, #tpu.memory_space<vmem>>, vector<1x8x24xf32>
    %44 = vector.shape_cast %43 : vector<1x8x24xf32> to vector<8x24xf32>
    %cst_28 = arith.constant dense<0.000000e+00> : vector<8x384xf32>
    %45 = tpu.matmul %44, %42, %cst_28 {dimension_numbers = #tpu.dot_dimension_numbers<[1], [0], [0], [1], [0, 0, 1, 1], [], []>} : vector<8x24xf32>, vector<24x384xf32>, vector<8x384xf32> -> vector<8x384xf32>
    %46 = arith.addf %39, %45 : vector<8x384xf32>
    %c367_i32_29 = arith.constant 367 : i32
    %47 = tpu.dynamic_rotate %32 by %c367_i32_29 dim 1 : vector<8x384xf32>, i32 -> vector<8x384xf32>
    %c366_i32_30 = arith.constant 366 : i32
    %48 = tpu.dynamic_rotate %32 by %c366_i32_30 dim 1 : vector<8x384xf32>, i32 -> vector<8x384xf32>
    %c365_i32_31 = arith.constant 365 : i32
    %49 = tpu.dynamic_rotate %32 by %c365_i32_31 dim 1 : vector<8x384xf32>, i32 -> vector<8x384xf32>
    %50 = tpu.concatenate %47, %48, %49 in 0 : vector<8x384xf32>, vector<8x384xf32>, vector<8x384xf32> -> vector<24x384xf32>
    %c2_32 = arith.constant 2 : index
    %c0_33 = arith.constant 0 : index
    %c0_34 = arith.constant 0 : index
    %51 = vector.load %arg5[%c2_32, %c0_33, %c0_34] : memref<3x8x24xf32, #tpu.memory_space<vmem>>, vector<1x8x24xf32>
    %52 = vector.shape_cast %51 : vector<1x8x24xf32> to vector<8x24xf32>
    %cst_35 = arith.constant dense<0.000000e+00> : vector<8x384xf32>
    %53 = tpu.matmul %52, %50, %cst_35 {dimension_numbers = #tpu.dot_dimension_numbers<[1], [0], [0], [1], [0, 0, 1, 1], [], []>} : vector<8x24xf32>, vector<24x384xf32>, vector<8x384xf32> -> vector<8x384xf32>
    %54 = arith.addf %46, %53 : vector<8x384xf32>
    %c0_36 = arith.constant 0 : index
    %c0_37 = arith.constant 0 : index
    %55 = vector.load %arg6[%c0_36, %c0_37] : memref<8x1xf32, #tpu.memory_space<vmem>>, vector<8x1xf32>
    %56 = vector.broadcast %55 : vector<8x1xf32> to vector<8x384xf32>
    %57 = arith.addf %54, %56 : vector<8x384xf32>
    %58 = arith.addf %1, %57 : vector<8x384xf32>
    %c0_38 = arith.constant 0 : index
    %c0_39 = arith.constant 0 : index
    %c0_40 = arith.constant 0 : index
    %59 = vector.load %arg7[%c0_38, %c0_39, %c0_40] : memref<1x8x384xf32, #tpu.memory_space<vmem>>, vector<1x8x384xf32>
    %60 = vector.shape_cast %59 : vector<1x8x384xf32> to vector<8x384xf32>
    %61 = vector.shape_cast %58 : vector<8x384xf32> to vector<1x8x384xf32>
    tpu.vector_store %arg7[%c0_38, %c0_39, %c0_40], %61 {strides = array<i32>} : memref<1x8x384xf32, #tpu.memory_space<vmem>>, vector<1x8x384xf32>,
    return
  }
  func.func @transform_0(%arg0: i32) -> (i32, i32, i32) {
    %c0_i32 = arith.constant 0 : i32
    %c0_i32_0 = arith.constant 0 : i32
    %c0_i32_1 = arith.constant 0 : i32
    return %arg0, %c0_i32, %c0_i32_0 : i32, i32, i32
  }
  func.func @transform_1(%arg0: i32) -> (i32, i32) {
    %c0_i32 = arith.constant 0 : i32
    %c0_i32_0 = arith.constant 0 : i32
    %c0_i32_1 = arith.constant 0 : i32
    return %c0_i32, %c0_i32_0 : i32, i32
  }
  func.func @transform_2(%arg0: i32) -> (i32, i32, i32) {
    %c0_i32 = arith.constant 0 : i32
    %c0_i32_0 = arith.constant 0 : i32
    %c0_i32_1 = arith.constant 0 : i32
    %c0_i32_2 = arith.constant 0 : i32
    return %c0_i32, %c0_i32_0, %c0_i32_1 : i32, i32, i32
  }
  func.func @transform_3(%arg0: i32) -> (i32, i32) {
    %c0_i32 = arith.constant 0 : i32
    %c0_i32_0 = arith.constant 0 : i32
    %c0_i32_1 = arith.constant 0 : i32
    return %c0_i32, %c0_i32_0 : i32, i32
  }
  func.func @transform_4(%arg0: i32) -> (i32, i32, i32) {
    %c0_i32 = arith.constant 0 : i32
    %c0_i32_0 = arith.constant 0 : i32
    %c0_i32_1 = arith.constant 0 : i32
    %c0_i32_2 = arith.constant 0 : i32
    return %c0_i32, %c0_i32_0, %c0_i32_1 : i32, i32, i32
  }
  func.func @transform_5(%arg0: i32) -> (i32, i32) {
    %c0_i32 = arith.constant 0 : i32
    %c0_i32_0 = arith.constant 0 : i32
    %c0_i32_1 = arith.constant 0 : i32
    return %c0_i32, %c0_i32_0 : i32, i32
  }
  func.func @transform_6(%arg0: i32) -> (i32, i32, i32) {
    %c0_i32 = arith.constant 0 : i32
    %c0_i32_0 = arith.constant 0 : i32
    %c0_i32_1 = arith.constant 0 : i32
    return %arg0, %c0_i32, %c0_i32_0 : i32, i32, i32
  }
}

</mosaic_0001>

<llo_original>
// kernel: tpu_custom_call.1
$region0: #{tpu_custom_call.1}
  #allocation0 [shape = 'u32[]', space=smem, size = 0x4, offset = 0x4, fixed_abs, tag = 'smem constant byte address 0x4 - core index']
  #allocation1 [shape = 'u32[72,128]{1,0:T(1,128)}', space=vmem, size = 0x9000, scoped, tag = 'internal scratch']
  %s0 = inlined_call_operand.hbm [shape: f32[2,8,384], index: 0, kind: input, shape index: {}]
  %s1 = inlined_call_operand.vmem [shape: f32[1,384], index: 1, kind: input, shape index: {}]
  %s2 = inlined_call_operand.hbm [shape: f32[3,8,24], index: 2, kind: input, shape index: {}]
  %s3 = inlined_call_operand.vmem [shape: f32[8,1], index: 3, kind: input, shape index: {}]
  %s4 = inlined_call_operand.hbm [shape: f32[3,8,24], index: 4, kind: input, shape index: {}]
  %s5 = inlined_call_operand.vmem [shape: f32[8,1], index: 5, kind: input, shape index: {}]
  %s6 = inlined_call_operand.hbm [shape: f32[2,8,384], index: 6, kind: output, shape index: {}]
  %s7 = sld [smem:[#allocation0]]
  $region69: #{tpu_custom_call.1} parent=0
    _
  %s9 = ssub.s32 1, %s7
  %s10 = scalar_select 0, %s9, %s7
  $region1: #{tpu_custom_call.1} parent=0
    #allocation2 [shape = 'u8[24576]{0}', space=vmem, size = 0x6000, scoped, tag = 'input window, operand 0']
    #allocation3 [shape = 's32[2]{0}', space=sflag, size = 0x8, scoped, tag = 'scoped memory for tpu_custom_call.1']
    #allocation4 [shape = 's32[2]{0}', space=sflag, size = 0x8, scoped, tag = 'scoped memory for tpu_custom_call.1']
    #allocation5 [shape = 'u8[12288]{0}', space=vmem, size = 0x3000, scoped, tag = 'input window, operand 2, single buffered']
    #allocation6 [shape = 's32[1]{0}', space=sflag, size = 0x4, scoped, tag = 'scoped memory for tpu_custom_call.1']
    #allocation7 [shape = 'u8[12288]{0}', space=vmem, size = 0x3000, scoped, tag = 'input window, operand 4, single buffered']
    #allocation8 [shape = 'u8[24576]{0}', space=vmem, size = 0x6000, scoped, tag = 'output window, operand 0']
    %11 = vsyncpa [#allocation3], 0
    %s12 = scalar_lea.sflag [#allocation3], 1
    %13 = vsyncpa %s12, 0
    %14 = vsyncpa [#allocation6], 0
    %15 = vsyncpa [#allocation4], 0
    %s16 = scalar_lea.sflag [#allocation4], 1
    %17 = vsyncpa %s16, 0
    loop: start=0, step=1, limit=4
    $region2: #{tpu_custom_call.1} parent=1 // loop_pre_header
      _
    $region3: #{tpu_custom_call.1} parent=1 // loop_header
      %s19 = sphi 0, %s23
      %p20 = scmp.ge.s32.totalorder %s19, 4
      %s29 = sphi 0, %s31
      %s32 = sphi 0, %s29
      %s33 = sphi 0, %s32
      %s49 = sphi 0, %s33
      %s53 = sphi 0, %s53
      %s55 = sphi 0, %s53
      %s56 = sphi 0, %s55
      %s70 = sphi 0, %s56
      %s74 = sphi 0, %s74
      %s76 = sphi 0, %s74
      %s77 = sphi 0, %s76
      %s91 = sphi 0, %s77
      %s95 = sphi 0, %s95
      %s97 = sphi 0, %s95
      %s98 = sphi 0, %s97
      %s112 = sphi 0, %s98
      %s116 = sphi 0, %s116
      %s118 = sphi 0, %s116
      %s119 = sphi 0, %s118
      %s133 = sphi 0, %s119
      %s137 = sphi 0, %s137
      %s139 = sphi 0, %s137
      %s140 = sphi 0, %s139
      %s154 = sphi 0, %s140
      %s160 = sphi 0, %s162
      %s163 = sphi 0, %s160
      %s164 = sphi 0, %s163
      %s180 = sphi 0, %s164
    $region4: #{tpu_custom_call.1} parent=1 // loop_header_branch
      %22 = sbr.rel (%p20) target = $region8
    $region5: #{tpu_custom_call.1} parent=1 // loop_body
      %s24 = ssub.s32 %s19, 1
      %s25 = ssub.s32 %s19, 2
      %s26 = sadd.s32 %s19, 1
      %s27 = ssub.s32 %s19, %s26
      %p28 = scmp.eq.s32.totalorder %s27, 0
      %s30 = sadd.s32 %s29, 1
      %s31 = scalar_select %p28, %s29, %s30
      %p34 = pneg %p28
      %p35 = scmp.eq.s32.totalorder %s19, 1
      %p36 = por %p34, %p35
      %p37 = scmp.ne.s32.totalorder %s29, %s32
      %p38 = scmp.eq.s32.totalorder %s19, 0
      %p39 = por %p37, %p38
      %p40 = scmp.ne.s32.totalorder %s29, %s32
      %p41 = scmp.eq.s32.totalorder %s24, 1
      %p42 = por %p40, %p41
      %p43 = scmp.ne.s32.totalorder %s32, %s33
      %p44 = scmp.eq.s32.totalorder %s24, 0
      %p45 = por %p43, %p44
      %p46 = scmp.ne.s32.totalorder %s32, %s33
      %p47 = scmp.eq.s32.totalorder %s25, 1
      %p48 = por %p46, %p47
      %p50 = scmp.ne.s32.totalorder %s33, %s49
      %p51 = scmp.eq.s32.totalorder %s25, 0
      %p52 = por %p50, %p51
      %s54 = sadd.s32 %s53, 1
      %p57 = scmp.eq.s32.totalorder %s19, 1
      %p58 = scmp.ne.s32.totalorder %s53, %s55
      %p59 = scmp.eq.s32.totalorder %s19, 0
      %p60 = por %p58, %p59
      %p61 = scmp.ne.s32.totalorder %s53, %s55
      %p62 = scmp.eq.s32.totalorder %s24, 1
      %p63 = por %p61, %p62
      %p64 = scmp.ne.s32.totalorder %s55, %s56
      %p65 = scmp.eq.s32.totalorder %s24, 0
      %p66 = por %p64, %p65
      %p67 = scmp.ne.s32.totalorder %s55, %s56
      %p68 = scmp.eq.s32.totalorder %s25, 1
      %p69 = por %p67, %p68
      %p71 = scmp.ne.s32.totalorder %s56, %s70
      %p72 = scmp.eq.s32.totalorder %s25, 0
      %p73 = por %p71, %p72
      %s75 = sadd.s32 %s74, 1
      %p78 = scmp.eq.s32.totalorder %s19, 1
      %p79 = scmp.ne.s32.totalorder %s74, %s76
      %p80 = scmp.eq.s32.totalorder %s19, 0
      %p81 = por %p79, %p80
      %p82 = scmp.ne.s32.totalorder %s74, %s76
      %p83 = scmp.eq.s32.totalorder %s24, 1
      %p84 = por %p82, %p83
      %p85 = scmp.ne.s32.totalorder %s76, %s77
      %p86 = scmp.eq.s32.totalorder %s24, 0
      %p87 = por %p85, %p86
      %p88 = scmp.ne.s32.totalorder %s76, %s77
      %p89 = scmp.eq.s32.totalorder %s25, 1
      %p90 = por %p88, %p89
      %p92 = scmp.ne.s32.totalorder %s77, %s91
      %p93 = scmp.eq.s32.totalorder %s25, 0
      %p94 = por %p92, %p93
      %s96 = sadd.s32 %s95, 1
      %p99 = scmp.eq.s32.totalorder %s19, 1
      %p100 = scmp.ne.s32.totalorder %s95, %s97
      %p101 = scmp.eq.s32.totalorder %s19, 0
      %p102 = por %p100, %p101
      %p103 = scmp.ne.s32.totalorder %s95, %s97
      %p104 = scmp.eq.s32.totalorder %s24, 1
      %p105 = por %p103, %p104
      %p106 = scmp.ne.s32.totalorder %s97, %s98
      %p107 = scmp.eq.s32.totalorder %s24, 0
      %p108 = por %p106, %p107
      %p109 = scmp.ne.s32.totalorder %s97, %s98
      %p110 = scmp.eq.s32.totalorder %s25, 1
      %p111 = por %p109, %p110
      %p113 = scmp.ne.s32.totalorder %s98, %s112
      %p114 = scmp.eq.s32.totalorder %s25, 0
      %p115 = por %p113, %p114
      %s117 = sadd.s32 %s116, 1
      %p120 = scmp.eq.s32.totalorder %s19, 1
      %p121 = scmp.ne.s32.totalorder %s116, %s118
      %p122 = scmp.eq.s32.totalorder %s19, 0
      %p123 = por %p121, %p122
      %p124 = scmp.ne.s32.totalorder %s116, %s118
      %p125 = scmp.eq.s32.totalorder %s24, 1
      %p126 = por %p124, %p125
      %p127 = scmp.ne.s32.totalorder %s118, %s119
      %p128 = scmp.eq.s32.totalorder %s24, 0
      %p129 = por %p127, %p128
      %p130 = scmp.ne.s32.totalorder %s118, %s119
      %p131 = scmp.eq.s32.totalorder %s25, 1
      %p132 = por %p130, %p131
      %p134 = scmp.ne.s32.totalorder %s119, %s133
      %p135 = scmp.eq.s32.totalorder %s25, 0
      %p136 = por %p134, %p135
      %s138 = sadd.s32 %s137, 1
      %p141 = scmp.eq.s32.totalorder %s19, 1
      %p142 = scmp.ne.s32.totalorder %s137, %s139
      %p143 = scmp.eq.s32.totalorder %s19, 0
      %p144 = por %p142, %p143
      %p145 = scmp.ne.s32.totalorder %s137, %s139
      %p146 = scmp.eq.s32.totalorder %s24, 1
      %p147 = por %p145, %p146
      %p148 = scmp.ne.s32.totalorder %s139, %s140
      %p149 = scmp.eq.s32.totalorder %s24, 0
      %p150 = por %p148, %p149
      %p151 = scmp.ne.s32.totalorder %s139, %s140
      %p152 = scmp.eq.s32.totalorder %s25, 1
      %p153 = por %p151, %p152
      %p155 = scmp.ne.s32.totalorder %s140, %s154
      %p156 = scmp.eq.s32.totalorder %s25, 0
      %p157 = por %p155, %p156
      %s158 = ssub.s32 %s19, %s26
      %p159 = scmp.eq.s32.totalorder %s158, 0
      %s161 = sadd.s32 %s160, 1
      %s162 = scalar_select %p159, %s160, %s161
      %p165 = pneg %p159
      %p166 = scmp.eq.s32.totalorder %s19, 1
      %p167 = por %p165, %p166
      %p168 = scmp.ne.s32.totalorder %s160, %s163
      %p169 = scmp.eq.s32.totalorder %s19, 0
      %p170 = por %p168, %p169
      %p171 = scmp.ne.s32.totalorder %s160, %s163
      %p172 = scmp.eq.s32.totalorder %s24, 1
      %p173 = por %p171, %p172
      %p174 = scmp.ne.s32.totalorder %s163, %s164
      %p175 = scmp.eq.s32.totalorder %s24, 0
      %p176 = por %p174, %p175
      %p177 = scmp.ne.s32.totalorder %s163, %s164
      %p178 = scmp.eq.s32.totalorder %s25, 1
      %p179 = por %p177, %p178
      %p181 = scmp.ne.s32.totalorder %s164, %s180
      %p182 = scmp.eq.s32.totalorder %s25, 0
      %p183 = por %p181, %p182
      %p184 = scmp.le.s32.totalorder 1, %s19
      %p185 = scmp.lt.s32.totalorder %s19, 3
      %p186 = pnand %p184, %p185
      %p187 = pneg %p186
      // Predicated region
      $region9: #{tpu_custom_call.1} parent=5 // pred_check
        _
      $region10: #{tpu_custom_call.1} parent=5 // pred_check_branch
        %189 = sbr.rel (%p186) target = $region12
      $region11: #{tpu_custom_call.1} parent=5 // pred_region
        %s190 = ssub.s32 %s19, 1
        // Predicated region
        $region13: #{tpu_custom_call.1} parent=11 // pred_check
          %p191 = pneg %p66
        $region14: #{tpu_custom_call.1} parent=11 // pred_check_branch
          %193 = sbr.rel (%p191) target = $region16
        $region15: #{tpu_custom_call.1} parent=11 // pred_region
          _
        $region16: #{tpu_custom_call.1} parent=11 // pred_fallthru
          _
        // Predicated region
        $region17: #{tpu_custom_call.1} parent=11 // pred_check
          %p194 = pneg %p87
        $region18: #{tpu_custom_call.1} parent=11 // pred_check_branch
          %196 = sbr.rel (%p194) target = $region20
        $region19: #{tpu_custom_call.1} parent=11 // pred_region
          %198 = vsyncadd [#allocation6], 0
          %s199 = sshll.u32 %s2, 4
          %s200 = int_to_ptr.hbm [resolvable:$true] %s199
          %s201 = sshll.u32 [#allocation5], 4
          %s202 = int_to_ptr.vmem [resolvable:$true] %s201
          %207 = dma.hbm_to_vmem [thread:$0]  %s200, 384, %s202, [#allocation6], 128, 128, 8
        $region20: #{tpu_custom_call.1} parent=11 // pred_fallthru
          _
        // Predicated region
        $region21: #{tpu_custom_call.1} parent=11 // pred_check
          %p208 = pneg %p108
        $region22: #{tpu_custom_call.1} parent=11 // pred_check_branch
          %210 = sbr.rel (%p208) target = $region24
        $region23: #{tpu_custom_call.1} parent=11 // pred_region
          _
        $region24: #{tpu_custom_call.1} parent=11 // pred_fallthru
          _
        // Predicated region
        $region25: #{tpu_custom_call.1} parent=11 // pred_check
          %p211 = pneg %p129
        $region26: #{tpu_custom_call.1} parent=11 // pred_check_branch
          %213 = sbr.rel (%p211) target = $region28
        $region27: #{tpu_custom_call.1} parent=11 // pred_region
          %215 = vsyncadd [#allocation6], 0
          %s216 = sshll.u32 %s4, 4
          %s217 = int_to_ptr.hbm [resolvable:$true] %s216
          %s218 = sshll.u32 [#allocation7], 4
          %s219 = int_to_ptr.vmem [resolvable:$true] %s218
          %224 = dma.hbm_to_vmem [thread:$0]  %s217, 384, %s219, [#allocation6], 128, 128, 8
        $region28: #{tpu_custom_call.1} parent=11 // pred_fallthru
          _
        // Predicated region
        $region29: #{tpu_custom_call.1} parent=11 // pred_check
          %p225 = pneg %p150
        $region30: #{tpu_custom_call.1} parent=11 // pred_check_branch
          %227 = sbr.rel (%p225) target = $region32
        $region31: #{tpu_custom_call.1} parent=11 // pred_region
          _
        $region32: #{tpu_custom_call.1} parent=11 // pred_fallthru
          _
      $region12: #{tpu_custom_call.1} parent=5 // pred_fallthru
        _
      %p228 = scmp.lt.s32.totalorder %s19, 2
      // Predicated region
      $region33: #{tpu_custom_call.1} parent=5 // pred_check
        %p229 = pneg %p228
      $region34: #{tpu_custom_call.1} parent=5 // pred_check_branch
        %231 = sbr.rel (%p229) target = $region36
      $region35: #{tpu_custom_call.1} parent=5 // pred_region
        // Predicated region
        $region37: #{tpu_custom_call.1} parent=35 // pred_check
          %p232 = pneg %p39
        $region38: #{tpu_custom_call.1} parent=35 // pred_check_branch
          %234 = sbr.rel (%p232) target = $region40
        $region39: #{tpu_custom_call.1} parent=35 // pred_region
          %s235 = sand.u32 %s29, 1
          %s236 = scalar_lea.sflag [#allocation3], %s235
          %s237 = sand.u32 %s29, 1
          %s238 = smul.addr %s237, 24
          %s239 = scalar_lea.vmem [#allocation2], %s238
          %241 = vsyncadd %s236, 0
          %s242 = smul.addr %s19, 3
          %s243 = smul.addr %s242, 8
          %s244 = scalar_lea.hbm %s0, %s243
          %s246 = sshll.u32 %s244, 4
          %s247 = int_to_ptr.hbm [resolvable:$true] %s246
          %s248 = sshll.u32 %s239, 4
          %s249 = int_to_ptr.vmem [resolvable:$true] %s248
          %251 = dma.hbm_to_vmem [thread:$0]  %s247, 384, %s249, %s236
        $region40: #{tpu_custom_call.1} parent=35 // pred_fallthru
          _
      $region36: #{tpu_custom_call.1} parent=5 // pred_fallthru
        _
      %p252 = scmp.le.s32.totalorder 1, %s19
      %p253 = scmp.lt.s32.totalorder %s19, 3
      %p254 = pnand %p252, %p253
      %p255 = pneg %p254
      // Predicated region
      $region41: #{tpu_custom_call.1} parent=5 // pred_check
        _
      $region42: #{tpu_custom_call.1} parent=5 // pred_check_branch
        %257 = sbr.rel (%p254) target = $region44
      $region43: #{tpu_custom_call.1} parent=5 // pred_region
        %s258 = ssub.s32 %s19, 1
        %s259 = sand.u32 %s32, 1
        %s260 = scalar_lea.sflag [#allocation3], %s259
        %s261 = sand.u32 %s32, 1
        %s262 = smul.addr %s261, 24
        %s263 = scalar_lea.vmem [#allocation2], %s262
        // Predicated region
        $region45: #{tpu_custom_call.1} parent=43 // pred_check
          %p264 = pneg %p45
        $region46: #{tpu_custom_call.1} parent=43 // pred_check_branch
          %266 = sbr.rel (%p264) target = $region48
        $region47: #{tpu_custom_call.1} parent=43 // pred_region
          %268 = dma.done %s260, 384
        $region48: #{tpu_custom_call.1} parent=43 // pred_fallthru
          _
        // Predicated region
        $region49: #{tpu_custom_call.1} parent=43 // pred_check
          %p269 = pneg %p87
        $region50: #{tpu_custom_call.1} parent=43 // pred_check_branch
          %271 = sbr.rel (%p269) target = $region52
        $region51: #{tpu_custom_call.1} parent=43 // pred_region
          %273 = dma.done [#allocation6], 384
        $region52: #{tpu_custom_call.1} parent=43 // pred_fallthru
          _
        // Predicated region
        $region53: #{tpu_custom_call.1} parent=43 // pred_check
          %p274 = pneg %p129
        $region54: #{tpu_custom_call.1} parent=43 // pred_check_branch
          %276 = sbr.rel (%p274) target = $region56
        $region55: #{tpu_custom_call.1} parent=43 // pred_region
          %278 = dma.done [#allocation6], 384
        $region56: #{tpu_custom_call.1} parent=43 // pred_fallthru
          _
        %s279 = sand.u32 %s32, 1
        %s280 = scalar_lea.sflag [#allocation3], %s279
        %s281 = sand.u32 %s32, 1
        %s282 = smul.addr %s281, 24
        %s283 = scalar_lea.vmem [#allocation2], %s282
        %p284 = pneg %p45
        %p285 = pneg %p42
        %p286 = pneg %p66
        %p287 = pneg %p63
        %p288 = pneg %p87
        %p289 = pneg %p84
        %p290 = pneg %p108
        %p291 = pneg %p105
        %p292 = pneg %p129
        %p293 = pneg %p126
        %p294 = pneg %p150
        %p295 = pneg %p147
        %p296 = pneg %p176
        %p297 = pneg %p173
        %s298 = sand.u32 %s163, 1
        %s299 = scalar_lea.sflag [#allocation4], %s298
        %s300 = sand.u32 %s163, 1
        %s301 = smul.addr %s300, 24
        %s302 = scalar_lea.vmem [#allocation8], %s301
        %v303 = vld [vmem:[%s263] sm:$0xff]
        %v304 = vld [vmem:[%s263 + $0x8] sm:$0xff]
        %v305 = vld [vmem:[%s263 + $0x10] sm:$0xff]
        %v306 = vld [vmem:[%s1] sm:$0x7]
        %307 = vrot.lane.b32.xlu0 %v303, 19
        %v308 = vpop.permute.xlu0 %307
        %309 = vrot.lane.b32.xlu0 %v304, 19
        %v310 = vpop.permute.xlu0 %309
        %311 = vrot.lane.b32.xlu0 %v305, 19
        %v312 = vpop.permute.xlu0 %311
        %v313 = vlaneseq
        %v314 = vand.u32 %v313, 127
        %vm315 = vcmp.lt.s32.totalorder %v314, 19
        %v316 = vsel %vm315, %v310, %v312
        %v317 = vsel %vm315, %v308, %v310
        %v318 = vsel %vm315, %v312, %v308
        %319 = vrot.lane.b32.xlu0 %v303, 18
        %v320 = vpop.permute.xlu0 %319
        %321 = vrot.lane.b32.xlu0 %v304, 18
        %v322 = vpop.permute.xlu0 %321
        %323 = vrot.lane.b32.xlu0 %v305, 18
        %v324 = vpop.permute.xlu0 %323
        %vm325 = vcmp.lt.s32.totalorder %v314, 18
        %v326 = vsel %vm325, %v322, %v324
        %v327 = vsel %vm325, %v320, %v322
        %v328 = vsel %vm325, %v324, %v320
        %329 = vrot.lane.b32.xlu0 %v303, 17
        %v330 = vpop.permute.xlu0 %329
        %331 = vrot.lane.b32.xlu0 %v304, 17
        %v332 = vpop.permute.xlu0 %331
        %333 = vrot.lane.b32.xlu0 %v305, 17
        %v334 = vpop.permute.xlu0 %333
        %vm335 = vcmp.lt.s32.totalorder %v314, 17
        %v336 = vsel %vm335, %v332, %v334
        %v337 = vsel %vm335, %v330, %v332
        %v338 = vsel %vm335, %v334, %v330
        %v339 = vld [vmem:[#allocation5] sm:$0xff]
        %340 = vrot.lane.b32.xlu0 %v303, 1
        %v341 = vpop.permute.xlu0 %340
        %342 = vrot.lane.b32.xlu0 %v304, 1
        %v343 = vpop.permute.xlu0 %342
        %344 = vrot.lane.b32.xlu0 %v305, 1
        %v345 = vpop.permute.xlu0 %344
        %vm346 = vcmp.lt.s32.totalorder %v314, 1
        %v347 = vsel %vm346, %v343, %v345
        %v348 = vsel %vm346, %v341, %v343
        %v349 = vsel %vm346, %v345, %v341
        %350 = vrot.lane.b32.xlu0 %v303, 127
        %v351 = vpop.permute.xlu0 %350
        %352 = vrot.lane.b32.xlu0 %v304, 127
        %v353 = vpop.permute.xlu0 %352
        %354 = vrot.lane.b32.xlu0 %v305, 127
        %v355 = vpop.permute.xlu0 %354
        %vm356 = vcmp.lt.s32.totalorder %v314, 127
        %v357 = vsel %vm356, %v353, %v355
        %v358 = vsel %vm356, %v351, %v353
        %v359 = vsel %vm356, %v355, %v351
        %s360 = scalar_lea.vmem [#allocation5], 8
        %v361 = vld [vmem:[%s360] sm:$0xff]
        %vm362 = vcmask 195584
        %v364 = vsel %vm362, %v361, 0
        %366 = vmatpush.msra.mxu0 0.0
        %367 = vmatpush.msra.mxu0 0.0
        %368 = vmatpush.msra.mxu0 0.0
        %369 = vmatpush.msra.mxu0 0.0
        %370 = vmatpush.msra.mxu0 0.0
        %371 = vmatpush.msra.mxu0 0.0
        %372 = vmatpush.msra.mxu0 0.0
        %373 = vmatpush.msra.mxu0 0.0
        %374 = vmatpush.msra.mxu0 0.0
        %375 = vmatpush.msra.mxu0 0.0
        %376 = vmatpush.msra.mxu0 0.0
        %377 = vmatpush.msra.mxu0 0.0
        %378 = vmatpush.msra.mxu0 0.0
        %379 = vmatpush.msra.mxu0 %v358
        %380 = vmatpush.msra.mxu0 %v303
        %381 = vmatpush.msra.mxu0 %v349
        %382 = vmatmul.f32.gmra.mxu0 %v364
        %v383 = vpop.f32.mrf.mxu0
        %v384 = vadd.f32 0.0, %v383
        %385 = vdwg.mxu0
        %386 = vmatpush.msra.mxu0 0.0
        %387 = vmatpush.msra.mxu0 0.0
        %388 = vmatpush.msra.mxu0 0.0
        %389 = vmatpush.msra.mxu0 0.0
        %390 = vmatpush.msra.mxu0 0.0
        %391 = vmatpush.msra.mxu0 0.0
        %392 = vmatpush.msra.mxu0 0.0
        %393 = vmatpush.msra.mxu0 0.0
        %394 = vmatpush.msra.mxu0 0.0
        %395 = vmatpush.msra.mxu0 0.0
        %396 = vmatpush.msra.mxu0 0.0
        %397 = vmatpush.msra.mxu0 0.0
        %398 = vmatpush.msra.mxu0 0.0
        %399 = vmatpush.msra.mxu0 %v357
        %400 = vmatpush.msra.mxu0 %v304
        %401 = vmatpush.msra.mxu0 %v348
        %402 = vmatmul.f32.gmra.mxu0 %v364
        %v403 = vpop.f32.mrf.mxu0
        %v404 = vadd.f32 0.0, %v403
        %405 = vdwg.mxu0
        %406 = vmatpush.msra.mxu0 0.0
        %407 = vmatpush.msra.mxu0 0.0
        %408 = vmatpush.msra.mxu0 0.0
        %409 = vmatpush.msra.mxu0 0.0
        %410 = vmatpush.msra.mxu0 0.0
        %411 = vmatpush.msra.mxu0 0.0
        %412 = vmatpush.msra.mxu0 0.0
        %413 = vmatpush.msra.mxu0 0.0
        %414 = vmatpush.msra.mxu0 0.0
        %415 = vmatpush.msra.mxu0 0.0
        %416 = vmatpush.msra.mxu0 0.0
        %417 = vmatpush.msra.mxu0 0.0
        %418 = vmatpush.msra.mxu0 0.0
        %419 = vmatpush.msra.mxu0 %v359
        %420 = vmatpush.msra.mxu0 %v305
        %421 = vmatpush.msra.mxu0 %v347
        %422 = vmatmul.f32.gmra.mxu0 %v364
        %v423 = vpop.f32.mrf.mxu0
        %v424 = vadd.f32 0.0, %v423
        %425 = vdwg.mxu0
        %v427 = vsel %vm362, %v339, 0
        %429 = vmatpush.msra.mxu0 0.0
        %430 = vmatpush.msra.mxu0 0.0
        %431 = vmatpush.msra.mxu0 0.0
        %432 = vmatpush.msra.mxu0 0.0
        %433 = vmatpush.msra.mxu0 0.0
        %434 = vmatpush.msra.mxu0 0.0
        %435 = vmatpush.msra.mxu0 0.0
        %436 = vmatpush.msra.mxu0 0.0
        %437 = vmatpush.msra.mxu0 0.0
        %438 = vmatpush.msra.mxu0 0.0
        %439 = vmatpush.msra.mxu0 0.0
        %440 = vmatpush.msra.mxu0 0.0
        %441 = vmatpush.msra.mxu0 0.0
        %442 = vmatpush.msra.mxu0 %v338
        %443 = vmatpush.msra.mxu0 %v328
        %444 = vmatpush.msra.mxu0 %v318
        %445 = vmatmul.f32.gmra.mxu0 %v427
        %v446 = vpop.f32.mrf.mxu0
        %v447 = vadd.f32 %v384, %v446
        %448 = vdwg.mxu0
        %449 = vmatpush.msra.mxu0 0.0
        %450 = vmatpush.msra.mxu0 0.0
        %451 = vmatpush.msra.mxu0 0.0
        %452 = vmatpush.msra.mxu0 0.0
        %453 = vmatpush.msra.mxu0 0.0
        %454 = vmatpush.msra.mxu0 0.0
        %455 = vmatpush.msra.mxu0 0.0
        %456 = vmatpush.msra.mxu0 0.0
        %457 = vmatpush.msra.mxu0 0.0
        %458 = vmatpush.msra.mxu0 0.0
        %459 = vmatpush.msra.mxu0 0.0
        %460 = vmatpush.msra.mxu0 0.0
        %461 = vmatpush.msra.mxu0 0.0
        %462 = vmatpush.msra.mxu0 %v337
        %463 = vmatpush.msra.mxu0 %v327
        %464 = vmatpush.msra.mxu0 %v317
        %465 = vmatmul.f32.gmra.mxu0 %v427
        %v466 = vpop.f32.mrf.mxu0
        %v467 = vadd.f32 %v404, %v466
        %468 = vdwg.mxu0
        %469 = vmatpush.msra.mxu0 0.0
        %470 = vmatpush.msra.mxu0 0.0
        %471 = vmatpush.msra.mxu0 0.0
        %472 = vmatpush.msra.mxu0 0.0
        %473 = vmatpush.msra.mxu0 0.0
        %474 = vmatpush.msra.mxu0 0.0
        %475 = vmatpush.msra.mxu0 0.0
        %476 = vmatpush.msra.mxu0 0.0
        %477 = vmatpush.msra.mxu0 0.0
        %478 = vmatpush.msra.mxu0 0.0
        %479 = vmatpush.msra.mxu0 0.0
        %480 = vmatpush.msra.mxu0 0.0
        %481 = vmatpush.msra.mxu0 0.0
        %482 = vmatpush.msra.mxu0 %v336
        %483 = vmatpush.msra.mxu0 %v326
        %484 = vmatpush.msra.mxu0 %v316
        %485 = vmatmul.f32.gmra.mxu0 %v427
        %v486 = vpop.f32.mrf.mxu0
        %v487 = vadd.f32 %v424, %v486
        %488 = vdwg.mxu0
        %489 = vrot.lane.b32.xlu0 %v303, 111
        %v490 = vpop.permute.xlu0 %489
        %491 = vrot.lane.b32.xlu0 %v304, 111
        %v492 = vpop.permute.xlu0 %491
        %493 = vrot.lane.b32.xlu0 %v305, 111
        %v494 = vpop.permute.xlu0 %493
        %vm495 = vcmp.lt.s32.totalorder %v314, 111
        %v496 = vsel %vm495, %v492, %v494
        %v497 = vsel %vm495, %v490, %v492
        %v498 = vsel %vm495, %v494, %v490
        %499 = vrot.lane.b32.xlu0 %v303, 110
        %v500 = vpop.permute.xlu0 %499
        %501 = vrot.lane.b32.xlu0 %v304, 110
        %v502 = vpop.permute.xlu0 %501
        %503 = vrot.lane.b32.xlu0 %v305, 110
        %v504 = vpop.permute.xlu0 %503
        %vm505 = vcmp.lt.s32.totalorder %v314, 110
        %v506 = vsel %vm505, %v502, %v504
        %v507 = vsel %vm505, %v500, %v502
        %v508 = vsel %vm505, %v504, %v500
        %509 = vrot.lane.b32.xlu0 %v303, 109
        %v510 = vpop.permute.xlu0 %509
        %511 = vrot.lane.b32.xlu0 %v304, 109
        %v512 = vpop.permute.xlu0 %511
        %513 = vrot.lane.b32.xlu0 %v305, 109
        %v514 = vpop.permute.xlu0 %513
        %vm515 = vcmp.lt.s32.totalorder %v314, 109
        %v516 = vsel %vm515, %v512, %v514
        %v517 = vsel %vm515, %v510, %v512
        %v518 = vsel %vm515, %v514, %v510
        %s519 = scalar_lea.vmem [#allocation5], 16
        %v520 = vld [vmem:[%s519] sm:$0xff]
        %v522 = vsel %vm362, %v520, 0
        %524 = vmatpush.msra.mxu0 0.0
        %525 = vmatpush.msra.mxu0 0.0
        %526 = vmatpush.msra.mxu0 0.0
        %527 = vmatpush.msra.mxu0 0.0
        %528 = vmatpush.msra.mxu0 0.0
        %529 = vmatpush.msra.mxu0 0.0
        %530 = vmatpush.msra.mxu0 0.0
        %531 = vmatpush.msra.mxu0 0.0
        %532 = vmatpush.msra.mxu0 0.0
        %533 = vmatpush.msra.mxu0 0.0
        %534 = vmatpush.msra.mxu0 0.0
        %535 = vmatpush.msra.mxu0 0.0
        %536 = vmatpush.msra.mxu0 0.0
        %537 = vmatpush.msra.mxu0 %v517
        %538 = vmatpush.msra.mxu0 %v507
        %539 = vmatpush.msra.mxu0 %v497
        %540 = vmatmul.f32.gmra.mxu0 %v522
        %v541 = vpop.f32.mrf.mxu0
        %v542 = vadd.f32 0.0, %v541
        %543 = vdwg.mxu0
        %544 = vmatpush.msra.mxu0 0.0
        %545 = vmatpush.msra.mxu0 0.0
        %546 = vmatpush.msra.mxu0 0.0
        %547 = vmatpush.msra.mxu0 0.0
        %548 = vmatpush.msra.mxu0 0.0
        %549 = vmatpush.msra.mxu0 0.0
        %550 = vmatpush.msra.mxu0 0.0
        %551 = vmatpush.msra.mxu0 0.0
        %552 = vmatpush.msra.mxu0 0.0
        %553 = vmatpush.msra.mxu0 0.0
        %554 = vmatpush.msra.mxu0 0.0
        %555 = vmatpush.msra.mxu0 0.0
        %556 = vmatpush.msra.mxu0 0.0
        %557 = vmatpush.msra.mxu0 %v516
        %558 = vmatpush.msra.mxu0 %v506
        %559 = vmatpush.msra.mxu0 %v496
        %560 = vmatmul.f32.gmra.mxu0 %v522
        %v561 = vpop.f32.mrf.mxu0
        %v562 = vadd.f32 0.0, %v561
        %563 = vdwg.mxu0
        %564 = vmatpush.msra.mxu0 0.0
        %565 = vmatpush.msra.mxu0 0.0
        %566 = vmatpush.msra.mxu0 0.0
        %567 = vmatpush.msra.mxu0 0.0
        %568 = vmatpush.msra.mxu0 0.0
        %569 = vmatpush.msra.mxu0 0.0
        %570 = vmatpush.msra.mxu0 0.0
        %571 = vmatpush.msra.mxu0 0.0
        %572 = vmatpush.msra.mxu0 0.0
        %573 = vmatpush.msra.mxu0 0.0
        %574 = vmatpush.msra.mxu0 0.0
        %575 = vmatpush.msra.mxu0 0.0
        %576 = vmatpush.msra.mxu0 0.0
        %577 = vmatpush.msra.mxu0 %v518
        %578 = vmatpush.msra.mxu0 %v508
        %579 = vmatpush.msra.mxu0 %v498
        %580 = vmatmul.f32.gmra.mxu0 %v522
        %v581 = vpop.f32.mrf.mxu0
        %v582 = vadd.f32 0.0, %v581
        %583 = vdwg.mxu0
        %v584 = vadd.f32 %v447, %v542
        %v585 = vadd.f32 %v467, %v562
        %v586 = vadd.f32 %v487, %v582
        %v587 = vld [vmem:[%s3] sm:$0xff]
        %589 = vset.pattern.permute.xlu0 0
        %590 = vperm.xlu0 %589, %v587
        %v591 = vpop.permute.xlu0 %590
        %v593 = vadd.f32 %v584, %v591
        %v594 = vadd.f32 %v585, %v591
        %v595 = vadd.f32 %v586, %v591
        %v596 = vmul.f32 %v593, 0.1
        %v597 = vmul.f32 %v594, 0.1
        %v598 = vmul.f32 %v595, 0.1
        %v599 = vmax.f32 %v593, %v596
        %v600 = vmax.f32 %v594, %v597
        %v601 = vmax.f32 %v595, %v598
        %v603 = vperm.slane %v306, 0
        %v604 = vperm.slane %v306, 1
        %v605 = vperm.slane %v306, 2
        %v609 = vmul.f32 %v599, %v603
        %v610 = vmul.f32 %v600, %v604
        %v611 = vmul.f32 %v601, %v605
        %612 = vrot.lane.b32.xlu0 %v609, 19
        %v613 = vpop.permute.xlu0 %612
        %614 = vrot.lane.b32.xlu0 %v610, 19
        %v615 = vpop.permute.xlu0 %614
        %616 = vrot.lane.b32.xlu0 %v611, 19
        %v617 = vpop.permute.xlu0 %616
        %v618 = vsel %vm315, %v615, %v617
        %v619 = vsel %vm315, %v613, %v615
        %v620 = vsel %vm315, %v617, %v613
        %621 = vrot.lane.b32.xlu0 %v609, 18
        %v622 = vpop.permute.xlu0 %621
        %623 = vrot.lane.b32.xlu0 %v610, 18
        %v624 = vpop.permute.xlu0 %623
        %625 = vrot.lane.b32.xlu0 %v611, 18
        %v626 = vpop.permute.xlu0 %625
        %v627 = vsel %vm325, %v624, %v626
        %v628 = vsel %vm325, %v622, %v624
        %v629 = vsel %vm325, %v626, %v622
        %630 = vrot.lane.b32.xlu0 %v609, 17
        %v631 = vpop.permute.xlu0 %630
        %632 = vrot.lane.b32.xlu0 %v610, 17
        %v633 = vpop.permute.xlu0 %632
        %634 = vrot.lane.b32.xlu0 %v611, 17
        %v635 = vpop.permute.xlu0 %634
        %v636 = vsel %vm335, %v633, %v635
        %v637 = vsel %vm335, %v631, %v633
        %v638 = vsel %vm335, %v635, %v631
        %v639 = vld [vmem:[#allocation7] sm:$0xff]
        %640 = vrot.lane.b32.xlu0 %v609, 1
        %v641 = vpop.permute.xlu0 %640
        %642 = vrot.lane.b32.xlu0 %v610, 1
        %v643 = vpop.permute.xlu0 %642
        %644 = vrot.lane.b32.xlu0 %v611, 1
        %v645 = vpop.permute.xlu0 %644
        %v646 = vsel %vm346, %v643, %v645
        %v647 = vsel %vm346, %v641, %v643
        %v648 = vsel %vm346, %v645, %v641
        %649 = vrot.lane.b32.xlu0 %v609, 127
        %v650 = vpop.permute.xlu0 %649
        %651 = vrot.lane.b32.xlu0 %v610, 127
        %v652 = vpop.permute.xlu0 %651
        %653 = vrot.lane.b32.xlu0 %v611, 127
        %v654 = vpop.permute.xlu0 %653
        %v655 = vsel %vm356, %v652, %v654
        %v656 = vsel %vm356, %v650, %v652
        %v657 = vsel %vm356, %v654, %v650
        %s658 = scalar_lea.vmem [#allocation7], 8
        %v659 = vld [vmem:[%s658] sm:$0xff]
        %v661 = vsel %vm362, %v659, 0
        %663 = vmatpush.msra.mxu0 0.0
        %664 = vmatpush.msra.mxu0 0.0
        %665 = vmatpush.msra.mxu0 0.0
        %666 = vmatpush.msra.mxu0 0.0
        %667 = vmatpush.msra.mxu0 0.0
        %668 = vmatpush.msra.mxu0 0.0
        %669 = vmatpush.msra.mxu0 0.0
        %670 = vmatpush.msra.mxu0 0.0
        %671 = vmatpush.msra.mxu0 0.0
        %672 = vmatpush.msra.mxu0 0.0
        %673 = vmatpush.msra.mxu0 0.0
        %674 = vmatpush.msra.mxu0 0.0
        %675 = vmatpush.msra.mxu0 0.0
        %676 = vmatpush.msra.mxu0 %v656
        %677 = vmatpush.msra.mxu0 %v609
        %678 = vmatpush.msra.mxu0 %v648
        %679 = vmatmul.f32.gmra.mxu0 %v661
        %v680 = vpop.f32.mrf.mxu0
        %v681 = vadd.f32 0.0, %v680
        %682 = vdwg.mxu0
        %683 = vmatpush.msra.mxu0 0.0
        %684 = vmatpush.msra.mxu0 0.0
        %685 = vmatpush.msra.mxu0 0.0
        %686 = vmatpush.msra.mxu0 0.0
        %687 = vmatpush.msra.mxu0 0.0
        %688 = vmatpush.msra.mxu0 0.0
        %689 = vmatpush.msra.mxu0 0.0
        %690 = vmatpush.msra.mxu0 0.0
        %691 = vmatpush.msra.mxu0 0.0
        %692 = vmatpush.msra.mxu0 0.0
        %693 = vmatpush.msra.mxu0 0.0
        %694 = vmatpush.msra.mxu0 0.0
        %695 = vmatpush.msra.mxu0 0.0
        %696 = vmatpush.msra.mxu0 %v655
        %697 = vmatpush.msra.mxu0 %v610
        %698 = vmatpush.msra.mxu0 %v647
        %699 = vmatmul.f32.gmra.mxu0 %v661
        %v700 = vpop.f32.mrf.mxu0
        %v701 = vadd.f32 0.0, %v700
        %702 = vdwg.mxu0
        %703 = vmatpush.msra.mxu0 0.0
        %704 = vmatpush.msra.mxu0 0.0
        %705 = vmatpush.msra.mxu0 0.0
        %706 = vmatpush.msra.mxu0 0.0
        %707 = vmatpush.msra.mxu0 0.0
        %708 = vmatpush.msra.mxu0 0.0
        %709 = vmatpush.msra.mxu0 0.0
        %710 = vmatpush.msra.mxu0 0.0
        %711 = vmatpush.msra.mxu0 0.0
        %712 = vmatpush.msra.mxu0 0.0
        %713 = vmatpush.msra.mxu0 0.0
        %714 = vmatpush.msra.mxu0 0.0
        %715 = vmatpush.msra.mxu0 0.0
        %716 = vmatpush.msra.mxu0 %v657
        %717 = vmatpush.msra.mxu0 %v611
        %718 = vmatpush.msra.mxu0 %v646
        %719 = vmatmul.f32.gmra.mxu0 %v661
        %v720 = vpop.f32.mrf.mxu0
        %v721 = vadd.f32 0.0, %v720
        %722 = vdwg.mxu0
        %v724 = vsel %vm362, %v639, 0
        %726 = vmatpush.msra.mxu0 0.0
        %727 = vmatpush.msra.mxu0 0.0
        %728 = vmatpush.msra.mxu0 0.0
        %729 = vmatpush.msra.mxu0 0.0
        %730 = vmatpush.msra.mxu0 0.0
        %731 = vmatpush.msra.mxu0 0.0
        %732 = vmatpush.msra.mxu0 0.0
        %733 = vmatpush.msra.mxu0 0.0
        %734 = vmatpush.msra.mxu0 0.0
        %735 = vmatpush.msra.mxu0 0.0
        %736 = vmatpush.msra.mxu0 0.0
        %737 = vmatpush.msra.mxu0 0.0
        %738 = vmatpush.msra.mxu0 0.0
        %739 = vmatpush.msra.mxu0 %v638
        %740 = vmatpush.msra.mxu0 %v629
        %741 = vmatpush.msra.mxu0 %v620
        %742 = vmatmul.f32.gmra.mxu0 %v724
        %v743 = vpop.f32.mrf.mxu0
        %v744 = vadd.f32 %v681, %v743
        %745 = vdwg.mxu0
        %746 = vmatpush.msra.mxu0 0.0
        %747 = vmatpush.msra.mxu0 0.0
        %748 = vmatpush.msra.mxu0 0.0
        %749 = vmatpush.msra.mxu0 0.0
        %750 = vmatpush.msra.mxu0 0.0
        %751 = vmatpush.msra.mxu0 0.0
        %752 = vmatpush.msra.mxu0 0.0
        %753 = vmatpush.msra.mxu0 0.0
        %754 = vmatpush.msra.mxu0 0.0
        %755 = vmatpush.msra.mxu0 0.0
        %756 = vmatpush.msra.mxu0 0.0
        %757 = vmatpush.msra.mxu0 0.0
        %758 = vmatpush.msra.mxu0 0.0
        %759 = vmatpush.msra.mxu0 %v637
        %760 = vmatpush.msra.mxu0 %v628
        %761 = vmatpush.msra.mxu0 %v619
        %762 = vmatmul.f32.gmra.mxu0 %v724
        %v763 = vpop.f32.mrf.mxu0
        %v764 = vadd.f32 %v701, %v763
        %765 = vdwg.mxu0
        %766 = vmatpush.msra.mxu0 0.0
        %767 = vmatpush.msra.mxu0 0.0
        %768 = vmatpush.msra.mxu0 0.0
        %769 = vmatpush.msra.mxu0 0.0
        %770 = vmatpush.msra.mxu0 0.0
        %771 = vmatpush.msra.mxu0 0.0
        %772 = vmatpush.msra.mxu0 0.0
        %773 = vmatpush.msra.mxu0 0.0
        %774 = vmatpush.msra.mxu0 0.0
        %775 = vmatpush.msra.mxu0 0.0
        %776 = vmatpush.msra.mxu0 0.0
        %777 = vmatpush.msra.mxu0 0.0
        %778 = vmatpush.msra.mxu0 0.0
        %779 = vmatpush.msra.mxu0 %v636
        %780 = vmatpush.msra.mxu0 %v627
        %781 = vmatpush.msra.mxu0 %v618
        %782 = vmatmul.f32.gmra.mxu0 %v724
        %v783 = vpop.f32.mrf.mxu0
        %v784 = vadd.f32 %v721, %v783
        %785 = vdwg.mxu0
        %786 = vrot.lane.b32.xlu0 %v609, 111
        %v787 = vpop.permute.xlu0 %786
        %788 = vrot.lane.b32.xlu0 %v610, 111
        %v789 = vpop.permute.xlu0 %788
        %790 = vrot.lane.b32.xlu0 %v611, 111
        %v791 = vpop.permute.xlu0 %790
        %v792 = vsel %vm495, %v789, %v791
        %v793 = vsel %vm495, %v787, %v789
        %v794 = vsel %vm495, %v791, %v787
        %795 = vrot.lane.b32.xlu0 %v609, 110
        %v796 = vpop.permute.xlu0 %795
        %797 = vrot.lane.b32.xlu0 %v610, 110
        %v798 = vpop.permute.xlu0 %797
        %799 = vrot.lane.b32.xlu0 %v611, 110
        %v800 = vpop.permute.xlu0 %799
        %v801 = vsel %vm505, %v798, %v800
        %v802 = vsel %vm505, %v796, %v798
        %v803 = vsel %vm505, %v800, %v796
        %804 = vrot.lane.b32.xlu0 %v609, 109
        %v805 = vpop.permute.xlu0 %804
        %806 = vrot.lane.b32.xlu0 %v610, 109
        %v807 = vpop.permute.xlu0 %806
        %808 = vrot.lane.b32.xlu0 %v611, 109
        %v809 = vpop.permute.xlu0 %808
        %v810 = vsel %vm515, %v807, %v809
        %v811 = vsel %vm515, %v805, %v807
        %v812 = vsel %vm515, %v809, %v805
        %s813 = scalar_lea.vmem [#allocation7], 16
        %v814 = vld [vmem:[%s813] sm:$0xff]
        %v816 = vsel %vm362, %v814, 0
        %818 = vmatpush.msra.mxu0 0.0
        %819 = vmatpush.msra.mxu0 0.0
        %820 = vmatpush.msra.mxu0 0.0
        %821 = vmatpush.msra.mxu0 0.0
        %822 = vmatpush.msra.mxu0 0.0
        %823 = vmatpush.msra.mxu0 0.0
        %824 = vmatpush.msra.mxu0 0.0
        %825 = vmatpush.msra.mxu0 0.0
        %826 = vmatpush.msra.mxu0 0.0
        %827 = vmatpush.msra.mxu0 0.0
        %828 = vmatpush.msra.mxu0 0.0
        %829 = vmatpush.msra.mxu0 0.0
        %830 = vmatpush.msra.mxu0 0.0
        %831 = vmatpush.msra.mxu0 %v811
        %832 = vmatpush.msra.mxu0 %v802
        %833 = vmatpush.msra.mxu0 %v793
        %834 = vmatmul.f32.gmra.mxu0 %v816
        %v835 = vpop.f32.mrf.mxu0
        %v836 = vadd.f32 0.0, %v835
        %837 = vdwg.mxu0
        %838 = vmatpush.msra.mxu0 0.0
        %839 = vmatpush.msra.mxu0 0.0
        %840 = vmatpush.msra.mxu0 0.0
        %841 = vmatpush.msra.mxu0 0.0
        %842 = vmatpush.msra.mxu0 0.0
        %843 = vmatpush.msra.mxu0 0.0
        %844 = vmatpush.msra.mxu0 0.0
        %845 = vmatpush.msra.mxu0 0.0
        %846 = vmatpush.msra.mxu0 0.0
        %847 = vmatpush.msra.mxu0 0.0
        %848 = vmatpush.msra.mxu0 0.0
        %849 = vmatpush.msra.mxu0 0.0
        %850 = vmatpush.msra.mxu0 0.0
        %851 = vmatpush.msra.mxu0 %v810
        %852 = vmatpush.msra.mxu0 %v801
        %853 = vmatpush.msra.mxu0 %v792
        %854 = vmatmul.f32.gmra.mxu0 %v816
        %v855 = vpop.f32.mrf.mxu0
        %v856 = vadd.f32 0.0, %v855
        %857 = vdwg.mxu0
        %858 = vmatpush.msra.mxu0 0.0
        %859 = vmatpush.msra.mxu0 0.0
        %860 = vmatpush.msra.mxu0 0.0
        %861 = vmatpush.msra.mxu0 0.0
        %862 = vmatpush.msra.mxu0 0.0
        %863 = vmatpush.msra.mxu0 0.0
        %864 = vmatpush.msra.mxu0 0.0
        %865 = vmatpush.msra.mxu0 0.0
        %866 = vmatpush.msra.mxu0 0.0
        %867 = vmatpush.msra.mxu0 0.0
        %868 = vmatpush.msra.mxu0 0.0
        %869 = vmatpush.msra.mxu0 0.0
        %870 = vmatpush.msra.mxu0 0.0
        %871 = vmatpush.msra.mxu0 %v812
        %872 = vmatpush.msra.mxu0 %v803
        %873 = vmatpush.msra.mxu0 %v794
        %874 = vmatmul.f32.gmra.mxu0 %v816
        %v875 = vpop.f32.mrf.mxu0
        %v876 = vadd.f32 0.0, %v875
        %877 = vdwg.mxu0
        %v878 = vadd.f32 %v744, %v836
        %v879 = vadd.f32 %v764, %v856
        %v880 = vadd.f32 %v784, %v876
        %v881 = vld [vmem:[%s5] sm:$0xff]
        %883 = vset.pattern.permute.xlu0 0
        %884 = vperm.xlu0 %883, %v881
        %v885 = vpop.permute.xlu0 %884
        %v887 = vadd.f32 %v878, %v885
        %v888 = vadd.f32 %v879, %v885
        %v889 = vadd.f32 %v880, %v885
        %v890 = vadd.f32 %v303, %v887
        %v891 = vadd.f32 %v304, %v888
        %v892 = vadd.f32 %v305, %v889
        %893 = vst [vmem:[%s302] sm:$0xff] %v890
        %894 = vst [vmem:[%s302 + $0x8] sm:$0xff] %v891
        %895 = vst [vmem:[%s302 + $0x10] sm:$0xff] %v892
        %s896 = sand.u32 %s163, 1
        %s897 = scalar_lea.sflag [#allocation4], %s896
        %s898 = sand.u32 %s163, 1
        %s899 = smul.addr %s898, 24
        %s900 = scalar_lea.vmem [#allocation8], %s899
        // Predicated region
        $region57: #{tpu_custom_call.1} parent=43 // pred_check
          %p901 = pneg %p173
        $region58: #{tpu_custom_call.1} parent=43 // pred_check_branch
          %903 = sbr.rel (%p901) target = $region60
        $region59: #{tpu_custom_call.1} parent=43 // pred_region
          %905 = vsyncadd %s897, 0
          %s906 = smul.addr %s24, 3
          %s907 = smul.addr %s906, 8
          %s908 = scalar_lea.hbm %s6, %s907
          %s910 = sshll.u32 %s900, 4
          %s911 = int_to_ptr.vmem [resolvable:$true] %s910
          %s912 = sshll.u32 %s908, 4
          %s913 = int_to_ptr.hbm [resolvable:$true] %s912
          %915 = dma.vmem_to_hbm [thread:$0]  %s911, 384, %s913, %s897
        $region60: #{tpu_custom_call.1} parent=43 // pred_fallthru
          _
      $region44: #{tpu_custom_call.1} parent=5 // pred_fallthru
        _
      %p916 = scmp.le.s32.totalorder 2, %s19
      // Predicated region
      $region61: #{tpu_custom_call.1} parent=5 // pred_check
        %p917 = pneg %p916
      $region62: #{tpu_custom_call.1} parent=5 // pred_check_branch
        %919 = sbr.rel (%p917) target = $region64
      $region63: #{tpu_custom_call.1} parent=5 // pred_region
        %s920 = ssub.s32 %s19, 2
        // Predicated region
        $region65: #{tpu_custom_call.1} parent=63 // pred_check
          %p921 = pneg %p179
        $region66: #{tpu_custom_call.1} parent=63 // pred_check_branch
          %923 = sbr.rel (%p921) target = $region68
        $region67: #{tpu_custom_call.1} parent=63 // pred_region
          %s924 = sand.u32 %s164, 1
          %s925 = scalar_lea.sflag [#allocation4], %s924
          %s926 = sand.u32 %s164, 1
          %s927 = smul.addr %s926, 24
          %s928 = scalar_lea.vmem [#allocation8], %s927
          %930 = dma.done %s925, 384
        $region68: #{tpu_custom_call.1} parent=63 // pred_fallthru
          _
      $region64: #{tpu_custom_call.1} parent=5 // pred_fallthru
        _
    $region6: #{tpu_custom_call.1} parent=1 // loop_footer
      %s23 = sadd.s32 1, %s19
    $region7: #{tpu_custom_call.1} parent=1 // loop_footer_branch
      %18 = sbr.rel target = $region3
    $region8: #{tpu_custom_call.1} parent=1 // loop_exit
      _
    %931 = vsyncpa [#allocation3], 1
    %s932 = scalar_lea.sflag [#allocation3], 1
    %933 = vsyncpa %s932, 1
    %934 = vsyncpa [#allocation6], 1
    %935 = vsyncpa [#allocation4], 1
    %s936 = scalar_lea.sflag [#allocation4], 1
    %937 = vsyncpa %s936, 1

</llo_original>
